<compile_context>
chip_gen: v7x
topology: tpu7x:2x2x1
jax: 0.10.0
libtpu: 0.0.40
codegen_flags: <defaults>
</compile_context>

<pallas_src>
import functools

import jax
import jax.numpy as jnp
from jax.experimental import pallas as pl
from jax.experimental.pallas import tpu as pltpu


def _round_up(x, m):
    return -(-x // m) * m


def _vmem_capacity_bytes():
    try:
        return int(pltpu.get_tpu_info().vmem_capacity_bytes)
    except Exception:
        return 128 * 1024 * 1024


_PHYS_VMEM = _vmem_capacity_bytes()
if _PHYS_VMEM <= 96 * 1024 * 1024:
    # v7x-class part (64 MiB VMEM/TC): leave headroom for compiler-internal
    # scratch on top of the f32 temporaries the budget already accounts for.
    _VMEM_LIMIT_BYTES = 40 * 1024 * 1024
    _FUSED_BUDGET = 16 * 1024 * 1024
    _LN_BUDGET = 10 * 1024 * 1024
else:
    # v5e / v6e (128 MiB VMEM): bigger tiles cut weight re-read traffic.
    _VMEM_LIMIT_BYTES = 96 * 1024 * 1024
    _FUSED_BUDGET = 40 * 1024 * 1024
    _LN_BUDGET = 24 * 1024 * 1024


def _clamp_small_rows(rows, tile):
    """If all rows fit in one tile, try to keep >=2 blocks (v7x megacore)."""
    if rows <= tile:
        half = _round_up(max(-(-rows // 2), 16), 16)
        tile = half if half < rows else _round_up(max(rows, 8), 16)
    return tile


# ----------------------------------------------------------------------------
# Standalone LayerNorm kernel (used when `fn` is an arbitrary callable)
# ----------------------------------------------------------------------------
def _layernorm_kernel(x_ref, gamma_ref, beta_ref, o_ref, *, eps):
    x = x_ref[...].astype(jnp.float32)                       # (row_tile, dim)
    mean = jnp.mean(x, axis=-1, keepdims=True)
    xc = x - mean
    var = jnp.mean(xc * xc, axis=-1, keepdims=True)          # centered 2-pass
    inv = jax.lax.rsqrt(var + eps)
    g = gamma_ref[...].astype(jnp.float32)                   # (1, dim)
    b = beta_ref[...].astype(jnp.float32)                    # (1, dim)
    o_ref[...] = (xc * inv * g + b).astype(o_ref.dtype)


def _pick_ln_row_tile(dim, x_bytes, budget):
    def fits(rt):
        pipe = 4 * rt * dim * x_bytes      # in + out, double buffered
        temps = 4 * rt * dim * 4           # f32 intermediates inside the body
        return pipe + temps <= budget
    for rt in range(1024, 127, -128):      # prefer multiples of 128
        if fits(rt):
            return rt
    for rt in range(128, 15, -16):
        if fits(rt):
            return rt
    return 16


def layernorm_pallas(x, gamma, beta, *, eps=1e-5):
    """x: (..., dim); gamma, beta: (dim,). LayerNorm over the last axis."""
    orig_shape = x.shape
    dim = orig_shape[-1]
    x2 = x.reshape(-1, dim)
    rows = x2.shape[0]
    x_bytes = jnp.dtype(x.dtype).itemsize

    row_tile = _pick_ln_row_tile(dim, x_bytes, _LN_BUDGET)
    row_tile = _clamp_small_rows(rows, row_tile)

    rows_pad = _round_up(rows, row_tile)
    if rows_pad != rows:
        x2 = jnp.pad(x2, ((0, rows_pad - rows), (0, 0)))

    gamma2 = gamma.reshape(1, dim).astype(jnp.float32)
    beta2 = beta.reshape(1, dim).astype(jnp.float32)

    out = pl.pallas_call(
        functools.partial(_layernorm_kernel, eps=eps),
        out_shape=jax.ShapeDtypeStruct((rows_pad, dim), x.dtype),
        grid_spec=pltpu.PrefetchScalarGridSpec(
            num_scalar_prefetch=0,
            grid=(rows_pad // row_tile,),
            in_specs=[
                pl.BlockSpec((row_tile, dim), lambda i: (i, 0)),
                pl.BlockSpec((1, dim), lambda i: (0, 0)),
                pl.BlockSpec((1, dim), lambda i: (0, 0)),
            ],
            out_specs=pl.BlockSpec((row_tile, dim), lambda i: (i, 0)),
        ),
        compiler_params=pltpu.CompilerParams(
            dimension_semantics=("parallel",),
            vmem_limit_bytes=_VMEM_LIMIT_BYTES),
    )(x2, gamma2, beta2)

    if rows_pad != rows:
        out = out[:rows]
    return out.reshape(orig_shape)


# ----------------------------------------------------------------------------
# Fused PreNorm + Linear kernel.
#   * LayerNorm is computed once per row tile (j == 0) into a bf16 VMEM
#     scratch and reused for every output-column tile j.
#   * gamma/beta are pre-folded into w/b on the host, so the kernel only does
#     (x - mean) * inv before the dot.
#   * MXU sees bf16 x bf16 with f32 accumulation.
# ----------------------------------------------------------------------------
def _prenorm_linear_kernel(x_ref, w_ref, b_ref, o_ref, normed_ref, *, eps):
    @pl.when(pl.program_id(1) == 0)
    def _():
        x = x_ref[...].astype(jnp.float32)                   # (tm, d_in)
        mean = jnp.mean(x, axis=-1, keepdims=True)
        xc = x - mean
        var = jnp.mean(xc * xc, axis=-1, keepdims=True)      # centered 2-pass
        inv = jax.lax.rsqrt(var + eps)
        normed_ref[...] = (xc * inv).astype(normed_ref.dtype)

    acc = jnp.dot(normed_ref[...], w_ref[...],
                  preferred_element_type=jnp.float32)        # (tm, tn) on MXU
    o_ref[...] = (acc + b_ref[...].astype(jnp.float32)).astype(o_ref.dtype)


def _pick_fused_tile_m(d_in, tn, x_bytes, budget):
    def fits(tm):
        pipe = 2 * tm * d_in * x_bytes          # x, double buffered
        pipe += 2 * d_in * tn * 2               # w (bf16), double buffered
        pipe += 2 * tm * tn * x_bytes           # out, double buffered
        pipe += 2 * 8 * tn * 4                  # bias (sublane-padded)
        scratch = tm * d_in * 2                 # cached normed tile (bf16)
        temps = 4 * tm * d_in * 4               # f32 LN intermediates
        return pipe + scratch + temps <= budget
    for tm in range(1024, 127, -128):           # prefer multiples of 128
        if fits(tm):
            return tm
    for tm in range(128, 15, -16):
        if fits(tm):
            return tm
    return 16


def prenorm_linear_pallas(x, gamma, beta, w, b, *, eps=1e-5):
    """Computes (LayerNorm(x) @ w + b) in one fused kernel.

    x: (..., d_in); gamma, beta: (d_in,); w: (d_in, d_out); b: (d_out,).
    K (= d_in) is kept whole per block because the LayerNorm statistics need
    the full feature dimension; M and N are tiled (M "parallel", N
    "arbitrary" so the cached normed tile is reused across N).
    """
    orig_shape = x.shape
    d_in = orig_shape[-1]
    d_out = w.shape[1]
    x2 = x.reshape(-1, d_in)
    rows = x2.shape[0]
    x_bytes = jnp.dtype(x.dtype).itemsize

    # Fold LayerNorm affine into the projection (host side, f32):
    #   LN(x) @ w + b == ((x - mean) * inv) @ (gamma[:, None] * w) + (beta @ w + b)
    w_eff = (w.astype(jnp.float32) * gamma.astype(jnp.float32)[:, None])
    b_eff = (b.astype(jnp.float32)
             + beta.astype(jnp.float32) @ w.astype(jnp.float32))

    # Lane-dense output tiles: pad d_out up to a multiple of 128 so stores are
    # unmasked; slice the padding off afterwards.
    d_out_pad = _round_up(max(d_out, 128), 128)
    if d_out_pad != d_out:
        w_eff = jnp.pad(w_eff, ((0, 0), (0, d_out_pad - d_out)))
        b_eff = jnp.pad(b_eff, ((0, d_out_pad - d_out),))
    # NOTE: on v5e (128-wide MXU, lower HBM BW) tn=128 can be preferable when
    # it lets tm grow; 256 matches the v6e/v7x MXU width.
    tn = 256 if d_out_pad % 256 == 0 else 128

    w_eff = w_eff.astype(jnp.bfloat16)          # halve the w DMA, bf16 MXU feed
    b_eff = b_eff.reshape(1, d_out_pad)         # stays f32 (post-MXU add)

    tm = _pick_fused_tile_m(d_in, tn, x_bytes, _FUSED_BUDGET)
    tm = _clamp_small_rows(rows, tm)

    rows_pad = _round_up(rows, tm)
    if rows_pad != rows:
        x2 = jnp.pad(x2, ((0, rows_pad - rows), (0, 0)))

    # TODO(synk): if profiling shows exposed DMA on the w stream, sweep
    # pipeline_mode=pl.Buffered(3) on the w BlockSpec (watch v7x VMEM).
    out = pl.pallas_call(
        functools.partial(_prenorm_linear_kernel, eps=eps),
        out_shape=jax.ShapeDtypeStruct((rows_pad, d_out_pad), x.dtype),
        grid_spec=pltpu.PrefetchScalarGridSpec(
            num_scalar_prefetch=0,
            grid=(rows_pad // tm, d_out_pad // tn),
            in_specs=[
                pl.BlockSpec((tm, d_in), lambda i, j: (i, 0)),
                pl.BlockSpec((d_in, tn), lambda i, j: (0, j)),
                pl.BlockSpec((1, tn), lambda i, j: (0, j)),
            ],
            out_specs=pl.BlockSpec((tm, tn), lambda i, j: (i, j)),
            scratch_shapes=[pltpu.VMEM((tm, d_in), jnp.bfloat16)],
        ),
        compiler_params=pltpu.CompilerParams(
            dimension_semantics=("parallel", "arbitrary"),
            vmem_limit_bytes=_VMEM_LIMIT_BYTES),
    )(x2, w_eff, b_eff)

    if rows_pad != rows:
        out = out[:rows]
    if d_out_pad != d_out:
        out = out[:, :d_out]
    return out.reshape(orig_shape[:-1] + (d_out,))


# ----------------------------------------------------------------------------
# PreNorm module equivalent
# ----------------------------------------------------------------------------
class Linear:
    """Dense-layer parameter holder; PreNorm detects it to take the fused path."""

    def __init__(self, w, b):
        self.w = w  # (d_in, d_out)
        self.b = b  # (d_out,)

    def __call__(self, x):
        # Unfused fallback (not used by PreNorm's fused path).
        return jnp.dot(x, self.w) + self.b


class PreNorm:
    """JAX/Pallas equivalent of:  y = fn(LayerNorm(dim)(x), **kwargs)."""

    def __init__(self, dim, fn, *, eps=1e-5):
        # nn.LayerNorm(dim) default init: weight = 1, bias = 0.
        self.gamma = jnp.ones((dim,), jnp.float32)
        self.beta = jnp.zeros((dim,), jnp.float32)
        self.eps = eps
        self.fn = fn

    def __call__(self, x, **kwargs):
        if isinstance(self.fn, Linear) and not kwargs:
            # Fused LayerNorm + matmul: normalized activation stays in VMEM.
            return prenorm_linear_pallas(x, self.gamma, self.beta,
                                         self.fn.w, self.fn.b, eps=self.eps)
        # Generic fn: standalone large-tile LayerNorm kernel, then fn.
        normed = layernorm_pallas(x, self.gamma, self.beta, eps=self.eps)
        return self.fn(normed, **kwargs)


if __name__ == "__main__":
    key = jax.random.PRNGKey(0)
    batch, seq, dim = 2, 8, 32

    kx, kw, kb = jax.random.split(key, 3)
    x = jax.random.normal(kx, (batch, seq, dim), jnp.float32)
    w = jax.random.normal(kw, (dim, dim), jnp.float32) * 0.02
    b = jax.random.normal(kb, (dim,), jnp.float32) * 0.01

    # 1) Fused PreNorm(Linear) path.
    prenorm_lin = PreNorm(dim, Linear(w, b))
    out_lin = jax.block_until_ready(prenorm_lin(x))

    # 2) Generic-fn path (standalone LayerNorm kernel + arbitrary callable).
    prenorm_gelu = PreNorm(dim, jax.nn.gelu)
    out_gelu = jax.block_until_ready(prenorm_gelu(x))

    # Reference in plain JAX (f32 throughout).
    mean = jnp.mean(x, axis=-1, keepdims=True)
    var = jnp.mean((x - mean) ** 2, axis=-1, keepdims=True)
    normed_ref = (x - mean) * jax.lax.rsqrt(var + 1e-5)
    ref_lin = normed_ref @ w + b
    ref_gelu = jax.nn.gelu(normed_ref)

    assert out_lin.shape == (batch, seq, dim)
    assert out_gelu.shape == (batch, seq, dim)
    # bf16 MXU operands in the fused path -> relaxed tolerance vs f32 reference.
    assert jnp.allclose(out_lin, ref_lin, atol=2e-2, rtol=2e-2), \
        float(jnp.max(jnp.abs(out_lin - ref_lin)))
    assert jnp.allclose(out_gelu, ref_gelu, atol=1e-4, rtol=1e-4), \
        float(jnp.max(jnp.abs(out_gelu - ref_gelu)))

    print("KERNEL_OK")
</pallas_src>

<mosaic_0001>
module attributes {stable_mosaic.version = 11 : i64} {
  func.func @_prenorm_linear_kernel(%arg0: i32, %arg1: i32, %arg2: memref<16x32xf32, #tpu.memory_space<vmem>>, %arg3: memref<32x128xbf16, #tpu.memory_space<vmem>>, %arg4: memref<1x128xf32, #tpu.memory_space<vmem>>, %arg5: memref<16x128xf32, #tpu.memory_space<vmem>>, %arg6: memref<16x32xbf16, #tpu.memory_space<vmem>>) attributes {dimension_semantics = [#tpu.dimension_semantics<parallel>, #tpu.dimension_semantics<arbitrary>], iteration_bounds = array<i64: 1, 1>, scalar_prefetch = 0 : i64, scratch_operands = 1 : i64, tpu.core_type = #tpu.core_type<tc>, window_params = [{transform_indices = @transform_0, window_bounds = array<i64: 16, 32>}, {transform_indices = @transform_1, window_bounds = array<i64: 32, 128>}, {transform_indices = @transform_2, window_bounds = array<i64: 1, 128>}, {transform_indices = @transform_3, window_bounds = array<i64: 16, 128>}]} {
    %c0_i32 = arith.constant 0 : i32
    %0 = arith.cmpi eq, %arg1, %c0_i32 : i32
    %1 = arith.extui %0 : i1 to i32
    %c0_i32_0 = arith.constant 0 : i32
    %2 = arith.cmpi ne, %1, %c0_i32_0 : i32
    scf.if %2 {
      %c0_8 = arith.constant 0 : index
      %c0_9 = arith.constant 0 : index
      %10 = vector.load %arg2[%c0_8, %c0_9] : memref<16x32xf32, #tpu.memory_space<vmem>>, vector<16x32xf32>
      %cst_10 = arith.constant dense<0.000000e+00> : vector<16xf32>
      %11 = vector.multi_reduction <add>, %10, %cst_10 [1] : vector<16x32xf32> to vector<16xf32>
      %12 = vector.shape_cast %11 : vector<16xf32> to vector<16x1xf32>
      %cst_11 = arith.constant 3.200000e+01 : f32
      %13 = vector.broadcast %cst_11 : f32 to vector<16x1xf32>
      %14 = arith.divf %12, %13 : vector<16x1xf32>
      %15 = vector.broadcast %14 : vector<16x1xf32> to vector<16x32xf32>
      %16 = arith.subf %10, %15 : vector<16x32xf32>
      %17 = arith.mulf %16, %16 : vector<16x32xf32>
      %cst_12 = arith.constant dense<0.000000e+00> : vector<16xf32>
      %18 = vector.multi_reduction <add>, %17, %cst_12 [1] : vector<16x32xf32> to vector<16xf32>
      %19 = vector.shape_cast %18 : vector<16xf32> to vector<16x1xf32>
      %cst_13 = arith.constant 3.200000e+01 : f32
      %20 = vector.broadcast %cst_13 : f32 to vector<16x1xf32>
      %21 = arith.divf %19, %20 : vector<16x1xf32>
      %cst_14 = arith.constant 9.99999974E-6 : f32
      %22 = vector.broadcast %cst_14 : f32 to vector<16x1xf32>
      %23 = arith.addf %21, %22 : vector<16x1xf32>
      %24 = math.rsqrt %23 : vector<16x1xf32>
      %25 = vector.broadcast %24 : vector<16x1xf32> to vector<16x32xf32>
      %26 = arith.mulf %16, %25 : vector<16x32xf32>
      %27 = arith.truncf %26 : vector<16x32xf32> to vector<16x32xbf16>
      %c0_15 = arith.constant 0 : index
      %c0_16 = arith.constant 0 : index
      %28 = vector.load %arg6[%c0_15, %c0_16] : memref<16x32xbf16, #tpu.memory_space<vmem>>, vector<16x32xbf16>
      tpu.vector_store %arg6[%c0_15, %c0_16], %27 {strides = array<i32>} : memref<16x32xbf16, #tpu.memory_space<vmem>>, vector<16x32xbf16>,
    } else {
    }
    %c0 = arith.constant 0 : index
    %c0_1 = arith.constant 0 : index
    %3 = vector.load %arg6[%c0, %c0_1] : memref<16x32xbf16, #tpu.memory_space<vmem>>, vector<16x32xbf16>
    %c0_2 = arith.constant 0 : index
    %c0_3 = arith.constant 0 : index
    %4 = vector.load %arg3[%c0_2, %c0_3] : memref<32x128xbf16, #tpu.memory_space<vmem>>, vector<32x128xbf16>
    %cst = arith.constant dense<0.000000e+00> : vector<16x128xf32>
    %5 = tpu.matmul %3, %4, %cst {dimension_numbers = #tpu.dot_dimension_numbers<[1], [0], [0], [1], [0, 0, 1, 1], [], []>} : vector<16x32xbf16>, vector<32x128xbf16>, vector<16x128xf32> -> vector<16x128xf32>
    %c0_4 = arith.constant 0 : index
    %c0_5 = arith.constant 0 : index
    %6 = vector.load %arg4[%c0_4, %c0_5] : memref<1x128xf32, #tpu.memory_space<vmem>>, vector<1x128xf32>
    %7 = vector.broadcast %6 : vector<1x128xf32> to vector<16x128xf32>
    %8 = arith.addf %5, %7 : vector<16x128xf32>
    %c0_6 = arith.constant 0 : index
    %c0_7 = arith.constant 0 : index
    %9 = vector.load %arg5[%c0_6, %c0_7] : memref<16x128xf32, #tpu.memory_space<vmem>>, vector<16x128xf32>
    tpu.vector_store %arg5[%c0_6, %c0_7], %8 {strides = array<i32>} : memref<16x128xf32, #tpu.memory_space<vmem>>, vector<16x128xf32>,
    return
  }
  func.func @transform_0(%arg0: i32, %arg1: i32) -> (i32, i32) {
    %c0_i32 = arith.constant 0 : i32
    %c0_i32_0 = arith.constant 0 : i32
    return %arg0, %c0_i32 : i32, i32
  }
  func.func @transform_1(%arg0: i32, %arg1: i32) -> (i32, i32) {
    %c0_i32 = arith.constant 0 : i32
    %c0_i32_0 = arith.constant 0 : i32
    return %c0_i32, %arg1 : i32, i32
  }
  func.func @transform_2(%arg0: i32, %arg1: i32) -> (i32, i32) {
    %c0_i32 = arith.constant 0 : i32
    %c0_i32_0 = arith.constant 0 : i32
    return %c0_i32, %arg1 : i32, i32
  }
  func.func @transform_3(%arg0: i32, %arg1: i32) -> (i32, i32) {
    %c0_i32 = arith.constant 0 : i32
    return %arg0, %arg1 : i32, i32
  }
}

</mosaic_0001>

<llo_original>
// kernel: tpu_custom_call.1
$region0: #{tpu_custom_call.1}
  #allocation0 [shape = 'u32[]', space=smem, size = 0x4, offset = 0x4, fixed_abs, tag = 'smem constant byte address 0x4 - core index']
  #allocation1 [shape = 'u32[144,128]{1,0:T(1,128)}', space=vmem, size = 0x12000, scoped, tag = 'internal scratch']
  #allocation2 [shape = 'bf16[16,32]{1,0:T(16,128)(2,1)}', space=vmem, size = 0x1000, scoped, tag = 'scratch operand']
  %s0 = inlined_call_operand.hbm [shape: f32[16,32], index: 0, kind: input, shape index: {}]
  %s1 = inlined_call_operand.hbm [shape: bf16[32,128], index: 1, kind: input, shape index: {}]
  %s2 = inlined_call_operand.hbm [shape: f32[1,128], index: 2, kind: input, shape index: {}]
  %s3 = inlined_call_operand.hbm [shape: f32[16,128], index: 3, kind: output, shape index: {}]
  %s4 = sld [smem:[#allocation0]]
  $region38: #{tpu_custom_call.1} parent=0
    _
  %s6 = ssub.s32 1, %s4
  %s7 = scalar_select 0, %s6, %s4
  $region1: #{tpu_custom_call.1} parent=0
    #allocation3 [shape = 'u8[8192]{0}', space=vmem, size = 0x2000, scoped, tag = 'input window, operand 0, single buffered']
    #allocation4 [shape = 's32[1]{0}', space=sflag, size = 0x4, scoped, tag = 'scoped memory for tpu_custom_call.1']
    #allocation5 [shape = 's32[1]{0}', space=sflag, size = 0x4, scoped, tag = 'scoped memory for tpu_custom_call.1']
    #allocation6 [shape = 'u8[8192]{0}', space=vmem, size = 0x2000, scoped, tag = 'input window, operand 1, single buffered']
    #allocation7 [shape = 's32[1]{0}', space=sflag, size = 0x4, scoped, tag = 'scoped memory for tpu_custom_call.1']
    #allocation8 [shape = 'u8[512]{0}', space=vmem, size = 0x400, scoped, tag = 'input window, operand 2, single buffered']
    #allocation9 [shape = 'u8[8192]{0}', space=vmem, size = 0x2000, scoped, tag = 'output window, operand 0, single buffered']
    %8 = vsyncpa [#allocation4], 0
    %9 = vsyncpa [#allocation7], 0
    %10 = vsyncpa [#allocation5], 0
    // Predicated region
    $region2: #{tpu_custom_call.1} parent=1 // pred_check
      _
    $region3: #{tpu_custom_call.1} parent=1 // pred_check_branch
      %12 = sbr.rel (0) target = $region5
    $region4: #{tpu_custom_call.1} parent=1 // pred_region
      %s14 = ssub.s32 256, 256
      %15 = vsyncadd [#allocation4], %s14
      %s16 = sshll.u32 [#allocation3], 4
      %s17 = int_to_ptr.vmem [resolvable:$true] %s16
      %22 = dma.hbm_to_vmem [thread:$0]  %s0, 256, %s17, [#allocation4], 128, 128, 8
    $region5: #{tpu_custom_call.1} parent=1 // pred_fallthru
      _
    // Predicated region
    $region6: #{tpu_custom_call.1} parent=1 // pred_check
      _
    $region7: #{tpu_custom_call.1} parent=1 // pred_check_branch
      %24 = sbr.rel (0) target = $region9
    $region8: #{tpu_custom_call.1} parent=1 // pred_region
      %s26 = ssub.s32 256, 256
      %27 = vsyncadd [#allocation7], %s26
      %s28 = sshll.u32 [#allocation6], 4
      %s29 = int_to_ptr.vmem [resolvable:$true] %s28
      %34 = dma.hbm_to_vmem [thread:$0]  %s1, 256, %s29, [#allocation7], 64, 64, 4
    $region9: #{tpu_custom_call.1} parent=1 // pred_fallthru
      _
    // Predicated region
    $region10: #{tpu_custom_call.1} parent=1 // pred_check
      _
    $region11: #{tpu_custom_call.1} parent=1 // pred_check_branch
      %36 = sbr.rel (0) target = $region13
    $region12: #{tpu_custom_call.1} parent=1 // pred_region
      %s38 = ssub.s32 16, 16
      %39 = vsyncadd [#allocation7], %s38
      %s41 = sshll.u32 [#allocation8], 4
      %s42 = int_to_ptr.vmem [resolvable:$true] %s41
      %44 = dma.hbm_to_vmem [thread:$0]  %s2, 16, %s42, [#allocation7]
    $region13: #{tpu_custom_call.1} parent=1 // pred_fallthru
      _
    // Predicated region
    $region14: #{tpu_custom_call.1} parent=1 // pred_check
      _
    $region15: #{tpu_custom_call.1} parent=1 // pred_check_branch
      %46 = sbr.rel (0) target = $region17
    $region16: #{tpu_custom_call.1} parent=1 // pred_region
      %47 = dma.done [#allocation4], 256
    $region17: #{tpu_custom_call.1} parent=1 // pred_fallthru
      _
    // Predicated region
    $region18: #{tpu_custom_call.1} parent=1 // pred_check
      _
    $region19: #{tpu_custom_call.1} parent=1 // pred_check_branch
      %49 = sbr.rel (0) target = $region21
    $region20: #{tpu_custom_call.1} parent=1 // pred_region
      %50 = dma.done [#allocation7], 256
    $region21: #{tpu_custom_call.1} parent=1 // pred_fallthru
      _
    // Predicated region
    $region22: #{tpu_custom_call.1} parent=1 // pred_check
      _
    $region23: #{tpu_custom_call.1} parent=1 // pred_check_branch
      %52 = sbr.rel (0) target = $region25
    $region24: #{tpu_custom_call.1} parent=1 // pred_region
      %53 = dma.done [#allocation7], 16
    $region25: #{tpu_custom_call.1} parent=1 // pred_fallthru
      _
    %p55 = scmp.eq.s32.totalorder 0, 0
    // Predicated region
    $region26: #{tpu_custom_call.1} parent=1 // pred_check
      %p56 = pneg %p55
    $region27: #{tpu_custom_call.1} parent=1 // pred_check_branch
      %58 = sbr.rel (%p56) target = $region29
    $region28: #{tpu_custom_call.1} parent=1 // pred_region
      %v59 = vld [vmem:[#allocation3] sm:$0xff]
      %v60 = vld [vmem:[#allocation3 + $0x8] sm:$0xff]
      %vm61 = vcmask 261120
      %v62 = vsel %vm61, %v59, 0.0
      %63 = vadd.xlane.f32.xlu0 %v62
      %v64 = vpop.xlane.xlu0 %63
      %v65 = vsel %vm61, %v60, 0.0
      %66 = vadd.xlane.f32.xlu0 %v65
      %v67 = vpop.xlane.xlu0 %66
      %v68 = vrcp.pop 32.0
      %v69 = vmul.f32 %v64, %v68
      %v70 = vmul.f32 %v67, %v68
      %v71 = vsub.f32 %v59, %v69
      %v72 = vsub.f32 %v60, %v70
      %v73 = vmul.f32 %v71, %v71
      %v74 = vmul.f32 %v72, %v72
      %v75 = vsel %vm61, %v73, 0.0
      %76 = vadd.xlane.f32.xlu0 %v75
      %v77 = vpop.xlane.xlu0 %76
      %v78 = vsel %vm61, %v74, 0.0
      %79 = vadd.xlane.f32.xlu0 %v78
      %v80 = vpop.xlane.xlu0 %79
      %v81 = vmul.f32 %v77, %v68
      %v82 = vmul.f32 %v80, %v68
      %v83 = vadd.f32 %v81, 1e-05
      %v84 = vadd.f32 %v82, 1e-05
      %v85 = vrsqrt.pop %v83
      %v86 = vrsqrt.pop %v84
      %v87 = vmul.f32 %v71, %v85
      %v88 = vmul.f32 %v72, %v86
      %v89 = vpack.c.bf16 %v88, %v87
      %90 = vst.msk [vmem:[#allocation2] sm:$0xff] %vm61, %v89
    $region29: #{tpu_custom_call.1} parent=1 // pred_fallthru
      _
    %v91 = vld [vmem:[#allocation2] sm:$0xff]
    %v92 = vld [vmem:[#allocation6] sm:$0xf]
    %v93 = vld [vmem:[#allocation6 + $0x4] sm:$0xf]
    %v94 = vld [vmem:[#allocation6 + $0x8] sm:$0xf]
    %v95 = vld [vmem:[#allocation6 + $0xc] sm:$0xf]
    %v96 = vld [vmem:[#allocation8] sm:$0x1]
    %v98 = vlaneseq
    %v99 = vshrl.u32 %v98, 7
    %v100 = vsub.s32 0, %v99
    %v101 = vrot.slane %v96, %v100
    %v107 = vunpack.c.l.b16 %v92
    %v108 = vunpack.c.l.b16 %v93
    %v109 = vunpack.c.l.b16 %v94
    %v110 = vunpack.c.l.b16 %v95
    %v111 = vpack.c.b16 %v108, %v107
    %v112 = vpack.c.b16 %v110, %v109
    %vm115 = vcmask 261120
    %v117 = vsel %vm115, %v91, 0
    %119 = vmatprep.subr.bf16.mxu0 0
    %120 = vmatpush1.bf16.msra.mxu0 %v111
    %121 = vmatprep.subr.bf16.mxu0 0
    %122 = vmatpush1.bf16.msra.mxu0 %v112
    %123 = vmatprep.subr.bf16.mxu0 0
    %124 = vmatpush1.bf16.msra.mxu0 0
    %125 = vmatprep.subr.bf16.mxu0 0
    %126 = vmatpush1.bf16.msra.mxu0 0
    %127 = vmatprep.subr.bf16.mxu0 0
    %128 = vmatpush1.bf16.msra.mxu0 0
    %129 = vmatprep.subr.bf16.mxu0 0
    %130 = vmatpush1.bf16.msra.mxu0 0
    %131 = vmatprep.subr.bf16.mxu0 0
    %132 = vmatpush1.bf16.msra.mxu0 0
    %133 = vmatprep.subr.bf16.mxu0 0
    %134 = vmatpush1.bf16.msra.mxu0 0
    %135 = vmatprep.subr.bf16.mxu0 0
    %136 = vmatpush1.bf16.msra.mxu0 0
    %137 = vmatprep.subr.bf16.mxu0 0
    %138 = vmatpush1.bf16.msra.mxu0 0
    %139 = vmatprep.subr.bf16.mxu0 0
    %140 = vmatpush1.bf16.msra.mxu0 0
    %141 = vmatprep.subr.bf16.mxu0 0
    %142 = vmatpush1.bf16.msra.mxu0 0
    %143 = vmatprep.subr.bf16.mxu0 0
    %144 = vmatpush1.bf16.msra.mxu0 0
    %145 = vmatprep.subr.bf16.mxu0 0
    %146 = vmatpush1.bf16.msra.mxu0 0
    %147 = vmatprep.subr.bf16.mxu0 0
    %148 = vmatpush1.bf16.msra.mxu0 0
    %149 = vmatprep.subr.bf16.mxu0 0
    %150 = vmatpush1.bf16.msra.mxu0 0
    %151 = vmatprep.mubr.bf16.mxu0 0
    %152 = vmatmul.mubr.bf16.gmra.mrb[0].mxu0 %v117
    %v153 = vpop.f32.mrb[0].mxu0
    %v154 = vadd.f32 %v101, %v153
    %v155 = vpop.f32.mrb[0].mxu0
    %v156 = vpop.f32.mrb[0].mxu0
    %v157 = vadd.f32 %v101, %v156
    %v158 = vpop.f32.mrb[0].mxu0
    %159 = vdwg.mxu0
    %160 = vst [vmem:[#allocation9] sm:$0xff] %v154
    %161 = vst [vmem:[#allocation9 + $0x8] sm:$0xff] %v157
    // Predicated region
    $region30: #{tpu_custom_call.1} parent=1 // pred_check
      _
    $region31: #{tpu_custom_call.1} parent=1 // pred_check_branch
      %163 = sbr.rel (0) target = $region33
    $region32: #{tpu_custom_call.1} parent=1 // pred_region
      %s165 = ssub.s32 256, 256
      %166 = vsyncadd [#allocation5], %s165
      %s167 = sshll.u32 [#allocation9], 4
      %s168 = int_to_ptr.vmem [resolvable:$true] %s167
      %173 = dma.vmem_to_hbm [thread:$0]  %s168, 256, %s3, [#allocation5], 128, 128, 8
    $region33: #{tpu_custom_call.1} parent=1 // pred_fallthru
      _
    // Predicated region
    $region34: #{tpu_custom_call.1} parent=1 // pred_check
      _
    $region35: #{tpu_custom_call.1} parent=1 // pred_check_branch
      %175 = sbr.rel (0) target = $region37
    $region36: #{tpu_custom_call.1} parent=1 // pred_region
      %176 = dma.done [#allocation5], 256
    $region37: #{tpu_custom_call.1} parent=1 // pred_fallthru
      _
    %177 = vsyncpa [#allocation4], 1
    %178 = vsyncpa [#allocation7], 1
    %179 = vsyncpa [#allocation5], 1

</llo_original>
